<compile_context>
chip_gen: v6e
topology: v6e:2x2x1
jax: 0.10.0
libtpu: 0.0.40
codegen_flags: <defaults>
</compile_context>

<pallas_src>
import jax
import jax.numpy as jnp
from jax.experimental import pallas as pl
from jax.experimental.pallas import tpu as pltpu


def _round_up(n, m):
    return ((n + m - 1) // m) * m


# -----------------------------------------------------------------------------
# Pallas kernel: in-kernel embedding gather + linear + FM + MLP + sigmoid
# (batch tile lives on the lane dimension everywhere)
# -----------------------------------------------------------------------------
def dfm_kernel(idx_ref, emb_t_ref, fc_t_ref,
               w1_ref, b1_ref, w2_ref, b2_ref, w3_ref, b3_ref,
               lb_ref, out_ref):
    F, tb = idx_ref.shape                 # (num_fields, batch_tile) int32 indices
    D, vocab = emb_t_ref.shape            # transposed embedding table (D, vocab)

    emb_t = emb_t_ref[...]                # (D, vocab)
    fc_t = fc_t_ref[...]                  # (1, vocab)  linear-term table
    row_ids = jax.lax.broadcasted_iota(jnp.int32, (vocab, tb), 0)

    e_rows = []                           # per-field embeddings, (D, tb) each
    lin = jnp.zeros((1, tb), jnp.float32)
    sum_e = jnp.zeros((D, tb), jnp.float32)
    sq = jnp.zeros((1, tb), jnp.float32)

    for f in range(F):                    # static, tiny F -> unrolled at trace
        idx_f = idx_ref[pl.ds(f, 1), :]                              # (1, tb)
        oh = (row_ids == idx_f).astype(jnp.float32)                  # (vocab, tb)
        # exact gather: table.T @ one_hot  ->  embedding rows, batch on lanes
        e_f = jnp.dot(emb_t, oh, preferred_element_type=jnp.float32)  # (D, tb)
        lin = lin + jnp.dot(fc_t, oh, preferred_element_type=jnp.float32)
        sum_e = sum_e + e_f
        sq = sq + jnp.sum(e_f * e_f, axis=0, keepdims=True)
        e_rows.append(e_f)

    e_flat = jnp.concatenate(e_rows, axis=0)          # (F*D, tb), row = f*D + d

    # --- FeaturesLinear: sum_f fc(x)[:, f] + bias
    linear_term = lin + lb_ref[...]                   # (1, tb)

    # --- FactorizationMachine (reduce_sum=True)
    fm_term = 0.5 * (jnp.sum(sum_e * sum_e, axis=0, keepdims=True) - sq)

    # --- MLP on flatten(embed_x); BN folded into w/b, Dropout = identity
    h1 = jnp.maximum(
        jnp.dot(w1_ref[...], e_flat, preferred_element_type=jnp.float32)
        + b1_ref[...], 0.0)                            # (H1, tb)
    h2 = jnp.maximum(
        jnp.dot(w2_ref[...], h1, preferred_element_type=jnp.float32)
        + b2_ref[...], 0.0)                            # (H2, tb)
    mlp_out = jnp.sum(h2 * w3_ref[...], axis=0, keepdims=True) + b3_ref[...]

    # Lane-dense output row (unmasked stores).
    out_ref[...] = jax.nn.sigmoid(linear_term + fm_term + mlp_out)


# -----------------------------------------------------------------------------
# Host-side wrapper: index prep (tiny) + batch-tiled pallas_call
# -----------------------------------------------------------------------------
def deepfm_forward(x, params, batch_tile=2048):
    """x: (B, F) int32 feature indices per field.  Returns (B,) float32."""
    offsets = params['offsets']                        # (F,) int32
    B, F = x.shape
    D, vocab = params['emb_t'].shape
    FD = F * D

    idx = (x.astype(jnp.int32) + offsets[None, :]).T   # (F, B) global rows

    # Lane tile: multiple of 128, capped at batch_tile; ensure >= 2 grid steps
    # when possible so "parallel" actually shards across both v7x TensorCores.
    Bp0 = _round_up(B, 128)
    tb = _round_up(min(batch_tile, Bp0), 128)
    if Bp0 // tb < 2 and Bp0 >= 256:
        tb = _round_up(Bp0 // 2, 128)
    Bp = _round_up(B, tb)
    if Bp != B:
        idx = jnp.pad(idx, ((0, 0), (0, Bp - B)))      # pad rows -> valid row 0

    n_tiles = Bp // tb
    grid = (n_tiles,)

    weights = (params['emb_t'], params['fc_t'],
               params['w1_t'], params['b1_c'], params['w2_t'], params['b2_c'],
               params['w3_c'], params['b3'], params['lin_bias'])

    def const_spec(a):
        return pl.BlockSpec(a.shape, lambda i: (0, 0))  # VMEM-resident const

    H1 = params['w1_t'].shape[0]
    H2 = params['w2_t'].shape[0]
    flops = 2 * Bp * (F * (D + 1) * vocab + FD * H1 + H1 * H2 + H2) + 10 * Bp * FD
    bytes_accessed = 4 * (Bp * F + Bp + sum(int(w.size) for w in weights))

    out = pl.pallas_call(
        dfm_kernel,
        out_shape=jax.ShapeDtypeStruct((n_tiles, tb), jnp.float32),
        grid=grid,
        in_specs=[pl.BlockSpec((F, tb), lambda i: (0, i))]
                 + [const_spec(w) for w in weights],
        out_specs=pl.BlockSpec((1, tb), lambda i: (i, 0)),
        compiler_params=pltpu.CompilerParams(
            dimension_semantics=("parallel",),
            vmem_limit_bytes=32 * 1024 * 1024),
        cost_estimate=pl.CostEstimate(
            flops=flops, transcendentals=Bp, bytes_accessed=bytes_accessed),
    )(idx, *weights)

    return out.reshape(-1)[:B]                          # == torch.squeeze(x, 1)


# -----------------------------------------------------------------------------
# Deterministic parameter construction (synthetic init, eval-mode BN folding)
# -----------------------------------------------------------------------------
def make_params(field_dims, embed_dim, mlp_dims, key):
    F = len(field_dims)
    vocab = int(sum(field_dims))
    D = embed_dim
    H1, H2 = mlp_dims
    in_dim = F * D

    ks = jax.random.split(key, 8)
    offsets = jnp.asarray(
        [0] + list(jnp.cumsum(jnp.asarray(field_dims))[:-1]), dtype=jnp.int32)

    embed_table = 0.1 * jax.random.normal(ks[0], (vocab, D), jnp.float32)
    fc_table = 0.1 * jax.random.normal(ks[1], (vocab, 1), jnp.float32)
    lin_bias = jnp.zeros((1, 1), jnp.float32)

    w1 = 0.1 * jax.random.normal(ks[2], (in_dim, H1), jnp.float32)
    b1 = 0.01 * jax.random.normal(ks[3], (1, H1), jnp.float32)
    w2 = 0.1 * jax.random.normal(ks[4], (H1, H2), jnp.float32)
    b2 = 0.01 * jax.random.normal(ks[5], (1, H2), jnp.float32)
    w3 = 0.1 * jax.random.normal(ks[6], (H2, 1), jnp.float32)
    b3 = 0.01 * jax.random.normal(ks[7], (1, 1), jnp.float32)

    # BatchNorm1d at init, eval mode: gamma=1, beta=0, mean=0, var=1.
    # Fold exactly into the preceding Linear: w' = w*s, b' = b*s + t.
    eps = 1e-5
    s1 = jnp.full((1, H1), 1.0 / jnp.sqrt(1.0 + eps), jnp.float32)
    s2 = jnp.full((1, H2), 1.0 / jnp.sqrt(1.0 + eps), jnp.float32)
    w1f, b1f = w1 * s1, b1 * s1
    w2f, b2f = w2 * s2, b2 * s2

    # All kernel-side params are stored transposed ("batch on lanes" layout).
    return dict(
        offsets=offsets,
        emb_t=embed_table.T,            # (D, vocab)
        fc_t=fc_table.T,                # (1, vocab)
        lin_bias=lin_bias,              # (1, 1)
        w1_t=w1f.T, b1_c=b1f.T,         # (H1, F*D), (H1, 1)
        w2_t=w2f.T, b2_c=b2f.T,         # (H2, H1),  (H2, 1)
        w3_c=w3, b3=b3,                 # (H2, 1),   (1, 1)
    )


# -----------------------------------------------------------------------------
# Pure-JAX reference (same eval-mode semantics) for a correctness check
# -----------------------------------------------------------------------------
def deepfm_reference(x, params):
    idx = x + params['offsets'][None, :]
    e = jnp.take(params['emb_t'].T, idx, axis=0)                 # (B, F, D)
    lin_vals = jnp.take(params['fc_t'].T, idx, axis=0)[..., 0]   # (B, F)
    linear = jnp.sum(lin_vals, axis=1, keepdims=True) + params['lin_bias']
    sum_f = jnp.sum(e, axis=1)
    fm = 0.5 * jnp.sum(sum_f * sum_f - jnp.sum(e * e, axis=1), axis=1, keepdims=True)
    ef = e.reshape(x.shape[0], -1)
    h1 = jnp.maximum(ef @ params['w1_t'].T + params['b1_c'].T, 0.0)
    h2 = jnp.maximum(h1 @ params['w2_t'].T + params['b2_c'].T, 0.0)
    mlp = h2 @ params['w3_c'] + params['b3']
    return jax.nn.sigmoid(linear + fm + mlp)[:, 0]


if __name__ == "__main__":
    field_dims = [10, 20, 30, 40]      # 4 fields, vocab = 100
    embed_dim = 16
    mlp_dims = (32, 16)
    B = 8

    key = jax.random.PRNGKey(0)
    k_params, k_x = jax.random.split(key)
    params = make_params(field_dims, embed_dim, mlp_dims, k_params)

    # x: (B, num_fields) int indices, each within its field's cardinality
    kx = jax.random.split(k_x, len(field_dims))
    x = jnp.stack([jax.random.randint(kx[f], (B,), 0, fd, dtype=jnp.int32)
                   for f, fd in enumerate(field_dims)], axis=1)   # (8, 4)

    out = deepfm_forward(x, params)
    jax.block_until_ready(out)
    assert out.shape == (B,) and out.dtype == jnp.float32
    ref = deepfm_reference(x, params)
    assert jnp.allclose(out, ref, atol=2e-3, rtol=2e-3)

    # Exercise the multi-step grid + padded-tail path (B not a tile multiple).
    B2 = 300
    kx2 = jax.random.split(jax.random.PRNGKey(1), len(field_dims))
    x2 = jnp.stack([jax.random.randint(kx2[f], (B2,), 0, fd, dtype=jnp.int32)
                    for f, fd in enumerate(field_dims)], axis=1)
    out2 = deepfm_forward(x2, params, batch_tile=128)
    jax.block_until_ready(out2)
    assert out2.shape == (B2,) and out2.dtype == jnp.float32
    assert jnp.allclose(out2, deepfm_reference(x2, params), atol=2e-3, rtol=2e-3)

    print("KERNEL_OK")
</pallas_src>

<mosaic_0001>
module attributes {stable_mosaic.version = 11 : i64} {
  func.func @dfm_kernel(%arg0: i32, %arg1: memref<4x128xi32, #tpu.memory_space<vmem>>, %arg2: memref<16x100xf32, #tpu.memory_space<vmem>>, %arg3: memref<1x100xf32, #tpu.memory_space<vmem>>, %arg4: memref<32x64xf32, #tpu.memory_space<vmem>>, %arg5: memref<32x1xf32, #tpu.memory_space<vmem>>, %arg6: memref<16x32xf32, #tpu.memory_space<vmem>>, %arg7: memref<16x1xf32, #tpu.memory_space<vmem>>, %arg8: memref<16x1xf32, #tpu.memory_space<vmem>>, %arg9: memref<1x1xf32, #tpu.memory_space<vmem>>, %arg10: memref<1x1xf32, #tpu.memory_space<vmem>>, %arg11: memref<1x128xf32, #tpu.memory_space<vmem>>) attributes {dimension_semantics = [#tpu.dimension_semantics<parallel>], iteration_bounds = array<i64: 1>, scalar_prefetch = 0 : i64, scratch_operands = 0 : i64, tpu.core_type = #tpu.core_type<tc>, window_params = [{transform_indices = @transform_0, window_bounds = array<i64: 4, 128>}, {pipeline_mode = #tpu.pipeline_mode<synchronous>, transform_indices = @transform_1, window_bounds = array<i64: 16, 100>}, {pipeline_mode = #tpu.pipeline_mode<synchronous>, transform_indices = @transform_2, window_bounds = array<i64: 1, 100>}, {pipeline_mode = #tpu.pipeline_mode<synchronous>, transform_indices = @transform_3, window_bounds = array<i64: 32, 64>}, {pipeline_mode = #tpu.pipeline_mode<synchronous>, transform_indices = @transform_4, window_bounds = array<i64: 32, 1>}, {pipeline_mode = #tpu.pipeline_mode<synchronous>, transform_indices = @transform_5, window_bounds = array<i64: 16, 32>}, {pipeline_mode = #tpu.pipeline_mode<synchronous>, transform_indices = @transform_6, window_bounds = array<i64: 16, 1>}, {pipeline_mode = #tpu.pipeline_mode<synchronous>, transform_indices = @transform_7, window_bounds = array<i64: 16, 1>}, {pipeline_mode = #tpu.pipeline_mode<synchronous>, transform_indices = @transform_8, window_bounds = array<i64: 1, 1>}, {pipeline_mode = #tpu.pipeline_mode<synchronous>, transform_indices = @transform_9, window_bounds = array<i64: 1, 1>}, {transform_indices = @transform_10, window_bounds = array<i64: 1, 128>}]} {
    %c0 = arith.constant 0 : index
    %c0_0 = arith.constant 0 : index
    %0 = vector.load %arg2[%c0, %c0_0] : memref<16x100xf32, #tpu.memory_space<vmem>>, vector<16x100xf32>
    %c0_1 = arith.constant 0 : index
    %c0_2 = arith.constant 0 : index
    %1 = vector.load %arg3[%c0_1, %c0_2] : memref<1x100xf32, #tpu.memory_space<vmem>>, vector<1x100xf32>
    %2 = tpu.iota {dimensions = array<i32: 0>} : vector<100x128xi32>
    %cst = arith.constant 0.000000e+00 : f32
    %3 = vector.broadcast %cst : f32 to vector<1x128xf32>
    %cst_3 = arith.constant 0.000000e+00 : f32
    %4 = vector.broadcast %cst_3 : f32 to vector<16x128xf32>
    %cst_4 = arith.constant 0.000000e+00 : f32
    %5 = vector.broadcast %cst_4 : f32 to vector<1x128xf32>
    %c0_5 = arith.constant 0 : index
    %c0_6 = arith.constant 0 : index
    %6 = vector.load %arg1[%c0_5, %c0_6] : memref<4x128xi32, #tpu.memory_space<vmem>>, vector<1x128xi32>
    %7 = vector.broadcast %6 : vector<1x128xi32> to vector<100x128xi32>
    %8 = arith.cmpi eq, %2, %7 : vector<100x128xi32>
    %9 = arith.extui %8 : vector<100x128xi1> to vector<100x128xi32>
    %10 = arith.sitofp %9 : vector<100x128xi32> to vector<100x128xf32>
    %cst_7 = arith.constant dense<0.000000e+00> : vector<16x128xf32>
    %11 = tpu.matmul %0, %10, %cst_7 {dimension_numbers = #tpu.dot_dimension_numbers<[1], [0], [0], [1], [0, 0, 1, 1], [], []>} : vector<16x100xf32>, vector<100x128xf32>, vector<16x128xf32> -> vector<16x128xf32>
    %cst_8 = arith.constant dense<0.000000e+00> : vector<1x128xf32>
    %12 = tpu.matmul %1, %10, %cst_8 {dimension_numbers = #tpu.dot_dimension_numbers<[1], [0], [0], [1], [0, 0, 1, 1], [], []>} : vector<1x100xf32>, vector<100x128xf32>, vector<1x128xf32> -> vector<1x128xf32>
    %13 = arith.addf %3, %12 : vector<1x128xf32>
    %14 = arith.addf %4, %11 : vector<16x128xf32>
    %15 = arith.mulf %11, %11 : vector<16x128xf32>
    %cst_9 = arith.constant dense<0.000000e+00> : vector<128xf32>
    %16 = vector.multi_reduction <add>, %15, %cst_9 [0] : vector<16x128xf32> to vector<128xf32>
    %17 = vector.shape_cast %16 : vector<128xf32> to vector<1x128xf32>
    %18 = arith.addf %5, %17 : vector<1x128xf32>
    %c1 = arith.constant 1 : index
    %c0_10 = arith.constant 0 : index
    %19 = vector.load %arg1[%c1, %c0_10] : memref<4x128xi32, #tpu.memory_space<vmem>>, vector<1x128xi32>
    %20 = vector.broadcast %19 : vector<1x128xi32> to vector<100x128xi32>
    %21 = arith.cmpi eq, %2, %20 : vector<100x128xi32>
    %22 = arith.extui %21 : vector<100x128xi1> to vector<100x128xi32>
    %23 = arith.sitofp %22 : vector<100x128xi32> to vector<100x128xf32>
    %cst_11 = arith.constant dense<0.000000e+00> : vector<16x128xf32>
    %24 = tpu.matmul %0, %23, %cst_11 {dimension_numbers = #tpu.dot_dimension_numbers<[1], [0], [0], [1], [0, 0, 1, 1], [], []>} : vector<16x100xf32>, vector<100x128xf32>, vector<16x128xf32> -> vector<16x128xf32>
    %cst_12 = arith.constant dense<0.000000e+00> : vector<1x128xf32>
    %25 = tpu.matmul %1, %23, %cst_12 {dimension_numbers = #tpu.dot_dimension_numbers<[1], [0], [0], [1], [0, 0, 1, 1], [], []>} : vector<1x100xf32>, vector<100x128xf32>, vector<1x128xf32> -> vector<1x128xf32>
    %26 = arith.addf %13, %25 : vector<1x128xf32>
    %27 = arith.addf %14, %24 : vector<16x128xf32>
    %28 = arith.mulf %24, %24 : vector<16x128xf32>
    %cst_13 = arith.constant dense<0.000000e+00> : vector<128xf32>
    %29 = vector.multi_reduction <add>, %28, %cst_13 [0] : vector<16x128xf32> to vector<128xf32>
    %30 = vector.shape_cast %29 : vector<128xf32> to vector<1x128xf32>
    %31 = arith.addf %18, %30 : vector<1x128xf32>
    %c2 = arith.constant 2 : index
    %c0_14 = arith.constant 0 : index
    %32 = vector.load %arg1[%c2, %c0_14] : memref<4x128xi32, #tpu.memory_space<vmem>>, vector<1x128xi32>
    %33 = vector.broadcast %32 : vector<1x128xi32> to vector<100x128xi32>
    %34 = arith.cmpi eq, %2, %33 : vector<100x128xi32>
    %35 = arith.extui %34 : vector<100x128xi1> to vector<100x128xi32>
    %36 = arith.sitofp %35 : vector<100x128xi32> to vector<100x128xf32>
    %cst_15 = arith.constant dense<0.000000e+00> : vector<16x128xf32>
    %37 = tpu.matmul %0, %36, %cst_15 {dimension_numbers = #tpu.dot_dimension_numbers<[1], [0], [0], [1], [0, 0, 1, 1], [], []>} : vector<16x100xf32>, vector<100x128xf32>, vector<16x128xf32> -> vector<16x128xf32>
    %cst_16 = arith.constant dense<0.000000e+00> : vector<1x128xf32>
    %38 = tpu.matmul %1, %36, %cst_16 {dimension_numbers = #tpu.dot_dimension_numbers<[1], [0], [0], [1], [0, 0, 1, 1], [], []>} : vector<1x100xf32>, vector<100x128xf32>, vector<1x128xf32> -> vector<1x128xf32>
    %39 = arith.addf %26, %38 : vector<1x128xf32>
    %40 = arith.addf %27, %37 : vector<16x128xf32>
    %41 = arith.mulf %37, %37 : vector<16x128xf32>
    %cst_17 = arith.constant dense<0.000000e+00> : vector<128xf32>
    %42 = vector.multi_reduction <add>, %41, %cst_17 [0] : vector<16x128xf32> to vector<128xf32>
    %43 = vector.shape_cast %42 : vector<128xf32> to vector<1x128xf32>
    %44 = arith.addf %31, %43 : vector<1x128xf32>
    %c3 = arith.constant 3 : index
    %c0_18 = arith.constant 0 : index
    %45 = vector.load %arg1[%c3, %c0_18] : memref<4x128xi32, #tpu.memory_space<vmem>>, vector<1x128xi32>
    %46 = vector.broadcast %45 : vector<1x128xi32> to vector<100x128xi32>
    %47 = arith.cmpi eq, %2, %46 : vector<100x128xi32>
    %48 = arith.extui %47 : vector<100x128xi1> to vector<100x128xi32>
    %49 = arith.sitofp %48 : vector<100x128xi32> to vector<100x128xf32>
    %cst_19 = arith.constant dense<0.000000e+00> : vector<16x128xf32>
    %50 = tpu.matmul %0, %49, %cst_19 {dimension_numbers = #tpu.dot_dimension_numbers<[1], [0], [0], [1], [0, 0, 1, 1], [], []>} : vector<16x100xf32>, vector<100x128xf32>, vector<16x128xf32> -> vector<16x128xf32>
    %cst_20 = arith.constant dense<0.000000e+00> : vector<1x128xf32>
    %51 = tpu.matmul %1, %49, %cst_20 {dimension_numbers = #tpu.dot_dimension_numbers<[1], [0], [0], [1], [0, 0, 1, 1], [], []>} : vector<1x100xf32>, vector<100x128xf32>, vector<1x128xf32> -> vector<1x128xf32>
    %52 = arith.addf %39, %51 : vector<1x128xf32>
    %53 = arith.addf %40, %50 : vector<16x128xf32>
    %54 = arith.mulf %50, %50 : vector<16x128xf32>
    %cst_21 = arith.constant dense<0.000000e+00> : vector<128xf32>
    %55 = vector.multi_reduction <add>, %54, %cst_21 [0] : vector<16x128xf32> to vector<128xf32>
    %56 = vector.shape_cast %55 : vector<128xf32> to vector<1x128xf32>
    %57 = arith.addf %44, %56 : vector<1x128xf32>
    %58 = tpu.concatenate %11, %24, %37, %50 in 0 : vector<16x128xf32>, vector<16x128xf32>, vector<16x128xf32>, vector<16x128xf32> -> vector<64x128xf32>
    %c0_22 = arith.constant 0 : index
    %c0_23 = arith.constant 0 : index
    %59 = vector.load %arg10[%c0_22, %c0_23] : memref<1x1xf32, #tpu.memory_space<vmem>>, vector<1x1xf32>
    %60 = vector.broadcast %59 : vector<1x1xf32> to vector<1x128xf32>
    %61 = arith.addf %52, %60 : vector<1x128xf32>
    %62 = arith.mulf %53, %53 : vector<16x128xf32>
    %cst_24 = arith.constant dense<0.000000e+00> : vector<128xf32>
    %63 = vector.multi_reduction <add>, %62, %cst_24 [0] : vector<16x128xf32> to vector<128xf32>
    %64 = vector.shape_cast %63 : vector<128xf32> to vector<1x128xf32>
    %65 = arith.subf %64, %57 : vector<1x128xf32>
    %cst_25 = arith.constant 5.000000e-01 : f32
    %66 = vector.broadcast %cst_25 : f32 to vector<1x128xf32>
    %67 = arith.mulf %66, %65 : vector<1x128xf32>
    %c0_26 = arith.constant 0 : index
    %c0_27 = arith.constant 0 : index
    %68 = vector.load %arg4[%c0_26, %c0_27] : memref<32x64xf32, #tpu.memory_space<vmem>>, vector<32x64xf32>
    %cst_28 = arith.constant dense<0.000000e+00> : vector<32x128xf32>
    %69 = tpu.matmul %68, %58, %cst_28 {dimension_numbers = #tpu.dot_dimension_numbers<[1], [0], [0], [1], [0, 0, 1, 1], [], []>} : vector<32x64xf32>, vector<64x128xf32>, vector<32x128xf32> -> vector<32x128xf32>
    %c0_29 = arith.constant 0 : index
    %c0_30 = arith.constant 0 : index
    %70 = vector.load %arg5[%c0_29, %c0_30] : memref<32x1xf32, #tpu.memory_space<vmem>>, vector<32x1xf32>
    %71 = vector.broadcast %70 : vector<32x1xf32> to vector<32x128xf32>
    %72 = arith.addf %69, %71 : vector<32x128xf32>
    %cst_31 = arith.constant 0.000000e+00 : f32
    %73 = vector.broadcast %cst_31 : f32 to vector<32x128xf32>
    %74 = arith.maximumf %72, %73 : vector<32x128xf32>
    %c0_32 = arith.constant 0 : index
    %c0_33 = arith.constant 0 : index
    %75 = vector.load %arg6[%c0_32, %c0_33] : memref<16x32xf32, #tpu.memory_space<vmem>>, vector<16x32xf32>
    %cst_34 = arith.constant dense<0.000000e+00> : vector<16x128xf32>
    %76 = tpu.matmul %75, %74, %cst_34 {dimension_numbers = #tpu.dot_dimension_numbers<[1], [0], [0], [1], [0, 0, 1, 1], [], []>} : vector<16x32xf32>, vector<32x128xf32>, vector<16x128xf32> -> vector<16x128xf32>
    %c0_35 = arith.constant 0 : index
    %c0_36 = arith.constant 0 : index
    %77 = vector.load %arg7[%c0_35, %c0_36] : memref<16x1xf32, #tpu.memory_space<vmem>>, vector<16x1xf32>
    %78 = vector.broadcast %77 : vector<16x1xf32> to vector<16x128xf32>
    %79 = arith.addf %76, %78 : vector<16x128xf32>
    %cst_37 = arith.constant 0.000000e+00 : f32
    %80 = vector.broadcast %cst_37 : f32 to vector<16x128xf32>
    %81 = arith.maximumf %79, %80 : vector<16x128xf32>
    %c0_38 = arith.constant 0 : index
    %c0_39 = arith.constant 0 : index
    %82 = vector.load %arg8[%c0_38, %c0_39] : memref<16x1xf32, #tpu.memory_space<vmem>>, vector<16x1xf32>
    %83 = vector.broadcast %82 : vector<16x1xf32> to vector<16x128xf32>
    %84 = arith.mulf %81, %83 : vector<16x128xf32>
    %cst_40 = arith.constant dense<0.000000e+00> : vector<128xf32>
    %85 = vector.multi_reduction <add>, %84, %cst_40 [0] : vector<16x128xf32> to vector<128xf32>
    %86 = vector.shape_cast %85 : vector<128xf32> to vector<1x128xf32>
    %c0_41 = arith.constant 0 : index
    %c0_42 = arith.constant 0 : index
    %87 = vector.load %arg9[%c0_41, %c0_42] : memref<1x1xf32, #tpu.memory_space<vmem>>, vector<1x1xf32>
    %88 = vector.broadcast %87 : vector<1x1xf32> to vector<1x128xf32>
    %89 = arith.addf %86, %88 : vector<1x128xf32>
    %90 = arith.addf %61, %67 : vector<1x128xf32>
    %91 = arith.addf %90, %89 : vector<1x128xf32>
    %92 = arith.negf %91 : vector<1x128xf32>
    %93 = math.exp %92 : vector<1x128xf32>
    %cst_43 = arith.constant 1.000000e+00 : f32
    %94 = vector.broadcast %cst_43 : f32 to vector<1x128xf32>
    %95 = arith.addf %94, %93 : vector<1x128xf32>
    %96 = arith.divf %94, %95 : vector<1x128xf32>
    %c0_44 = arith.constant 0 : index
    %c0_45 = arith.constant 0 : index
    %97 = vector.load %arg11[%c0_44, %c0_45] : memref<1x128xf32, #tpu.memory_space<vmem>>, vector<1x128xf32>
    tpu.vector_store %arg11[%c0_44, %c0_45], %96 {strides = array<i32>} : memref<1x128xf32, #tpu.memory_space<vmem>>, vector<1x128xf32>,
    return
  }
  func.func @transform_0(%arg0: i32) -> (i32, i32) {
    %c0_i32 = arith.constant 0 : i32
    %c0_i32_0 = arith.constant 0 : i32
    return %c0_i32, %arg0 : i32, i32
  }
  func.func @transform_1(%arg0: i32) -> (i32, i32) {
    %c0_i32 = arith.constant 0 : i32
    %c0_i32_0 = arith.constant 0 : i32
    %c0_i32_1 = arith.constant 0 : i32
    return %c0_i32, %c0_i32_0 : i32, i32
  }
  func.func @transform_2(%arg0: i32) -> (i32, i32) {
    %c0_i32 = arith.constant 0 : i32
    %c0_i32_0 = arith.constant 0 : i32
    %c0_i32_1 = arith.constant 0 : i32
    return %c0_i32, %c0_i32_0 : i32, i32
  }
  func.func @transform_3(%arg0: i32) -> (i32, i32) {
    %c0_i32 = arith.constant 0 : i32
    %c0_i32_0 = arith.constant 0 : i32
    %c0_i32_1 = arith.constant 0 : i32
    return %c0_i32, %c0_i32_0 : i32, i32
  }
  func.func @transform_4(%arg0: i32) -> (i32, i32) {
    %c0_i32 = arith.constant 0 : i32
    %c0_i32_0 = arith.constant 0 : i32
    %c0_i32_1 = arith.constant 0 : i32
    return %c0_i32, %c0_i32_0 : i32, i32
  }
  func.func @transform_5(%arg0: i32) -> (i32, i32) {
    %c0_i32 = arith.constant 0 : i32
    %c0_i32_0 = arith.constant 0 : i32
    %c0_i32_1 = arith.constant 0 : i32
    return %c0_i32, %c0_i32_0 : i32, i32
  }
  func.func @transform_6(%arg0: i32) -> (i32, i32) {
    %c0_i32 = arith.constant 0 : i32
    %c0_i32_0 = arith.constant 0 : i32
    %c0_i32_1 = arith.constant 0 : i32
    return %c0_i32, %c0_i32_0 : i32, i32
  }
  func.func @transform_7(%arg0: i32) -> (i32, i32) {
    %c0_i32 = arith.constant 0 : i32
    %c0_i32_0 = arith.constant 0 : i32
    %c0_i32_1 = arith.constant 0 : i32
    return %c0_i32, %c0_i32_0 : i32, i32
  }
  func.func @transform_8(%arg0: i32) -> (i32, i32) {
    %c0_i32 = arith.constant 0 : i32
    %c0_i32_0 = arith.constant 0 : i32
    %c0_i32_1 = arith.constant 0 : i32
    return %c0_i32, %c0_i32_0 : i32, i32
  }
  func.func @transform_9(%arg0: i32) -> (i32, i32) {
    %c0_i32 = arith.constant 0 : i32
    %c0_i32_0 = arith.constant 0 : i32
    %c0_i32_1 = arith.constant 0 : i32
    return %c0_i32, %c0_i32_0 : i32, i32
  }
  func.func @transform_10(%arg0: i32) -> (i32, i32) {
    %c0_i32 = arith.constant 0 : i32
    %c0_i32_0 = arith.constant 0 : i32
    return %arg0, %c0_i32 : i32, i32
  }
}

</mosaic_0001>

<llo_original>
// kernel: tpu_custom_call.1
$region0: #{tpu_custom_call.1}
  #allocation0 [shape = 'u32[]', space=smem, size = 0x4, offset = 0x4, fixed_abs, tag = 'smem constant byte address 0x4 - core index']
  #allocation1 [shape = 'u32[144,128]{1,0:T(1,128)}', space=vmem, size = 0x12000, scoped, tag = 'internal scratch']
  #allocation2 [shape = 'f32[1,1]{1,0:T(1,128)S(1)}', space=vmem, size = 0x200, scoped, tag = 'scoped memory for tpu_custom_call.1']
  #allocation3 [shape = 'f32[1,1]{1,0:T(1,128)S(1)}', space=vmem, size = 0x200, scoped, tag = 'scoped memory for tpu_custom_call.1']
  %s0 = inlined_call_operand.vmem [shape: s32[4,128], index: 0, kind: input, shape index: {}]
  %s1 = inlined_call_operand.vmem [shape: f32[16,100], index: 1, kind: input, shape index: {}]
  %s2 = inlined_call_operand.vmem [shape: f32[1,100], index: 2, kind: input, shape index: {}]
  %s3 = inlined_call_operand.vmem [shape: f32[32,64], index: 3, kind: input, shape index: {}]
  %s4 = inlined_call_operand.vmem [shape: f32[32,1], index: 4, kind: input, shape index: {}]
  %s5 = inlined_call_operand.vmem [shape: f32[16,32], index: 5, kind: input, shape index: {}]
  %s6 = inlined_call_operand.vmem [shape: f32[16,1], index: 6, kind: input, shape index: {}]
  %s7 = inlined_call_operand.vmem [shape: f32[16,1], index: 7, kind: input, shape index: {}]
  %s8 = inlined_call_operand.<no memory space> [shape: f32[1,1], index: 8, kind: input, shape index: {}]
  %s9 = inlined_call_operand.<no memory space> [shape: f32[1,1], index: 9, kind: input, shape index: {}]
  %s10 = inlined_call_operand.hbm [shape: f32[1,128], index: 10, kind: output, shape index: {}]
  %s11 = sld [smem:[#allocation0]]
  $region50: #{tpu_custom_call.1} parent=0
    _
  %s13 = ssub.s32 1, %s11
  %s14 = scalar_select 0, %s13, %s11
  %v15 = vstv %s8
  %16 = vst [vmem:[#allocation2] sm:$0x1] %v15
  %v17 = vstv %s9
  %18 = vst [vmem:[#allocation3] sm:$0x1] %v17
  $region1: #{tpu_custom_call.1} parent=0
    #allocation4 [shape = 'u8[512]{0}', space=vmem, size = 0x400, scoped, tag = 'output window, operand 0, single buffered']
    #allocation5 [shape = 's32[1]{0}', space=sflag, size = 0x4, scoped, tag = 'scoped memory for tpu_custom_call.1']
    %19 = vsyncpa [#allocation5], 0
    // Predicated region
    $region2: #{tpu_custom_call.1} parent=1 // pred_check
      _
    $region3: #{tpu_custom_call.1} parent=1 // pred_check_branch
      %21 = sbr.rel (0) target = $region5
    $region4: #{tpu_custom_call.1} parent=1 // pred_region
      _
    $region5: #{tpu_custom_call.1} parent=1 // pred_fallthru
      _
    // Predicated region
    $region6: #{tpu_custom_call.1} parent=1 // pred_check
      _
    $region7: #{tpu_custom_call.1} parent=1 // pred_check_branch
      %23 = sbr.rel (0) target = $region9
    $region8: #{tpu_custom_call.1} parent=1 // pred_region
      _
    $region9: #{tpu_custom_call.1} parent=1 // pred_fallthru
      _
    // Predicated region
    $region10: #{tpu_custom_call.1} parent=1 // pred_check
      _
    $region11: #{tpu_custom_call.1} parent=1 // pred_check_branch
      %25 = sbr.rel (0) target = $region13
    $region12: #{tpu_custom_call.1} parent=1 // pred_region
      _
    $region13: #{tpu_custom_call.1} parent=1 // pred_fallthru
      _
    // Predicated region
    $region14: #{tpu_custom_call.1} parent=1 // pred_check
      _
    $region15: #{tpu_custom_call.1} parent=1 // pred_check_branch
      %27 = sbr.rel (0) target = $region17
    $region16: #{tpu_custom_call.1} parent=1 // pred_region
      _
    $region17: #{tpu_custom_call.1} parent=1 // pred_fallthru
      _
    // Predicated region
    $region18: #{tpu_custom_call.1} parent=1 // pred_check
      _
    $region19: #{tpu_custom_call.1} parent=1 // pred_check_branch
      %29 = sbr.rel (0) target = $region21
    $region20: #{tpu_custom_call.1} parent=1 // pred_region
      _
    $region21: #{tpu_custom_call.1} parent=1 // pred_fallthru
      _
    // Predicated region
    $region22: #{tpu_custom_call.1} parent=1 // pred_check
      _
    $region23: #{tpu_custom_call.1} parent=1 // pred_check_branch
      %31 = sbr.rel (0) target = $region25
    $region24: #{tpu_custom_call.1} parent=1 // pred_region
      _
    $region25: #{tpu_custom_call.1} parent=1 // pred_fallthru
      _
    // Predicated region
    $region26: #{tpu_custom_call.1} parent=1 // pred_check
      _
    $region27: #{tpu_custom_call.1} parent=1 // pred_check_branch
      %33 = sbr.rel (0) target = $region29
    $region28: #{tpu_custom_call.1} parent=1 // pred_region
      _
    $region29: #{tpu_custom_call.1} parent=1 // pred_fallthru
      _
    // Predicated region
    $region30: #{tpu_custom_call.1} parent=1 // pred_check
      _
    $region31: #{tpu_custom_call.1} parent=1 // pred_check_branch
      %35 = sbr.rel (0) target = $region33
    $region32: #{tpu_custom_call.1} parent=1 // pred_region
      _
    $region33: #{tpu_custom_call.1} parent=1 // pred_fallthru
      _
    // Predicated region
    $region34: #{tpu_custom_call.1} parent=1 // pred_check
      _
    $region35: #{tpu_custom_call.1} parent=1 // pred_check_branch
      %37 = sbr.rel (0) target = $region37
    $region36: #{tpu_custom_call.1} parent=1 // pred_region
      _
    $region37: #{tpu_custom_call.1} parent=1 // pred_fallthru
      _
    // Predicated region
    $region38: #{tpu_custom_call.1} parent=1 // pred_check
      _
    $region39: #{tpu_custom_call.1} parent=1 // pred_check_branch
      %39 = sbr.rel (0) target = $region41
    $region40: #{tpu_custom_call.1} parent=1 // pred_region
      _
    $region41: #{tpu_custom_call.1} parent=1 // pred_fallthru
      _
    %v40 = vld [vmem:[%s1] sm:$0xff]
    %v41 = vld [vmem:[%s1 + $0x8] sm:$0xff]
    %v42 = vld [vmem:[%s2] sm:$0x1]
    %v43 = vlaneseq
    %v44 = vshrl.u32 %v43, 7
    %v45 = vadd.s32 %v44, 8
    %v46 = vadd.s32 %v44, 16
    %v47 = vadd.s32 %v44, 24
    %v48 = vadd.s32 %v44, 32
    %v49 = vadd.s32 %v44, 40
    %v50 = vadd.s32 %v44, 48
    %v51 = vadd.s32 %v44, 56
    %v52 = vadd.s32 %v44, 64
    %v53 = vadd.s32 %v44, 72
    %v54 = vadd.s32 %v44, 80
    %v55 = vadd.s32 %v44, 88
    %v56 = vadd.s32 %v44, 96
    %v57 = vld [vmem:[%s0] sm:$0x1]
    %v58 = vlaneseq
    %v59 = vshrl.u32 %v58, 7
    %v60 = vsub.s32 0, %v59
    %v61 = vrot.slane %v57, %v60
    %vm62 = vcmp.eq.s32.totalorder %v44, %v61
    %vm63 = vcmp.eq.s32.totalorder %v45, %v61
    %vm64 = vcmp.eq.s32.totalorder %v46, %v61
    %vm65 = vcmp.eq.s32.totalorder %v47, %v61
    %vm66 = vcmp.eq.s32.totalorder %v48, %v61
    %vm67 = vcmp.eq.s32.totalorder %v49, %v61
    %vm68 = vcmp.eq.s32.totalorder %v50, %v61
    %vm69 = vcmp.eq.s32.totalorder %v51, %v61
    %vm70 = vcmp.eq.s32.totalorder %v52, %v61
    %vm71 = vcmp.eq.s32.totalorder %v53, %v61
    %vm72 = vcmp.eq.s32.totalorder %v54, %v61
    %vm73 = vcmp.eq.s32.totalorder %v55, %v61
    %vm74 = vcmp.eq.s32.totalorder %v56, %v61
    %v75 = vsel %vm62, 1, 0
    %v76 = vsel %vm63, 1, 0
    %v77 = vsel %vm64, 1, 0
    %v78 = vsel %vm65, 1, 0
    %v79 = vsel %vm66, 1, 0
    %v80 = vsel %vm67, 1, 0
    %v81 = vsel %vm68, 1, 0
    %v82 = vsel %vm69, 1, 0
    %v83 = vsel %vm70, 1, 0
    %v84 = vsel %vm71, 1, 0
    %v85 = vsel %vm72, 1, 0
    %v86 = vsel %vm73, 1, 0
    %v87 = vsel %vm74, 1, 0
    %v88 = vcvt.s32.f32 %v75
    %v89 = vcvt.s32.f32 %v76
    %v90 = vcvt.s32.f32 %v77
    %v91 = vcvt.s32.f32 %v78
    %v92 = vcvt.s32.f32 %v79
    %v93 = vcvt.s32.f32 %v80
    %v94 = vcvt.s32.f32 %v81
    %v95 = vcvt.s32.f32 %v82
    %v96 = vcvt.s32.f32 %v83
    %v97 = vcvt.s32.f32 %v84
    %v98 = vcvt.s32.f32 %v85
    %v99 = vcvt.s32.f32 %v86
    %v100 = vcvt.s32.f32 %v87
    %vm101 = vcmask 818176
    %v103 = vsel %vm101, %v40, 0
    %v106 = vsel %vm101, %v41, 0
    %vm108 = vcmask 1043456
    %v110 = vsel %vm108, %v100, 0
    %112 = vmatprep.subr.mxu0 0.0
    %113 = vmatpush1.msra.mxu0 0.0
    %114 = vmatprep.subr.mxu0 0.0
    %115 = vmatpush1.msra.mxu0 0.0
    %116 = vmatprep.subr.mxu0 0.0
    %117 = vmatpush1.msra.mxu0 0.0
    %118 = vmatprep.subr.mxu0 0.0
    %119 = vmatpush1.msra.mxu0 %v110
    %120 = vmatprep.subr.mxu0 0.0
    %121 = vmatpush1.msra.mxu0 %v99
    %122 = vmatprep.subr.mxu0 0.0
    %123 = vmatpush1.msra.mxu0 %v98
    %124 = vmatprep.subr.mxu0 0.0
    %125 = vmatpush1.msra.mxu0 %v97
    %126 = vmatprep.subr.mxu0 0.0
    %127 = vmatpush1.msra.mxu0 %v96
    %128 = vmatprep.subr.mxu0 0.0
    %129 = vmatpush1.msra.mxu0 %v95
    %130 = vmatprep.subr.mxu0 0.0
    %131 = vmatpush1.msra.mxu0 %v94
    %132 = vmatprep.subr.mxu0 0.0
    %133 = vmatpush1.msra.mxu0 %v93
    %134 = vmatprep.subr.mxu0 0.0
    %135 = vmatpush1.msra.mxu0 %v92
    %136 = vmatprep.subr.mxu0 0.0
    %137 = vmatpush1.msra.mxu0 %v91
    %138 = vmatprep.subr.mxu0 0.0
    %139 = vmatpush1.msra.mxu0 %v90
    %140 = vmatprep.subr.mxu0 0.0
    %141 = vmatpush1.msra.mxu0 %v89
    %142 = vmatprep.subr.mxu0 0.0
    %143 = vmatpush1.msra.mxu0 %v88
    %144 = vmatprep.subr.mxu0 0.0
    %145 = vmatpush2.msra.mxu0 0.0
    %146 = vmatprep.subr.mxu0 0.0
    %147 = vmatpush2.msra.mxu0 0.0
    %148 = vmatprep.subr.mxu0 0.0
    %149 = vmatpush2.msra.mxu0 0.0
    %150 = vmatprep.subr.mxu0 0.0
    %151 = vmatpush2.msra.mxu0 0.0
    %152 = vmatprep.subr.mxu0 0.0
    %153 = vmatpush2.msra.mxu0 0.0
    %154 = vmatprep.subr.mxu0 0.0
    %155 = vmatpush2.msra.mxu0 0.0
    %156 = vmatprep.subr.mxu0 0.0
    %157 = vmatpush2.msra.mxu0 0.0
    %158 = vmatprep.subr.mxu0 0.0
    %159 = vmatpush2.msra.mxu0 0.0
    %160 = vmatprep.subr.mxu0 0.0
    %161 = vmatpush2.msra.mxu0 0.0
    %162 = vmatprep.subr.mxu0 0.0
    %163 = vmatpush2.msra.mxu0 0.0
    %164 = vmatprep.subr.mxu0 0.0
    %165 = vmatpush2.msra.mxu0 0.0
    %166 = vmatprep.subr.mxu0 0.0
    %167 = vmatpush2.msra.mxu0 0.0
    %168 = vmatprep.subr.mxu0 0.0
    %169 = vmatpush2.msra.mxu0 0.0
    %170 = vmatprep.subr.mxu0 0.0
    %171 = vmatpush2.msra.mxu0 0.0
    %172 = vmatprep.subr.mxu0 0.0
    %173 = vmatpush2.msra.mxu0 0.0
    %174 = vmatprep.subr.mxu0 0.0
    %175 = vmatpush2.msra.mxu0 0.0
    %176 = vmatprep.mubr.f32.mxu0 0.0
    %177 = vmatmul.mubr.f32.gmra.mxu0 %v103
    %v178 = vpop.f32.mrf.mxu0
    %v179 = vadd.f32 0.0, %v178
    %v180 = vpop.f32.mrf.mxu0
    %181 = vmatprep.mubr.f32.mxu0 0.0
    %182 = vmatmul.mubr.f32.gmra.mxu0 %v106
    %v183 = vpop.f32.mrf.mxu0
    %v184 = vadd.f32 0.0, %v183
    %v185 = vpop.f32.mrf.mxu0
    %186 = vdwg.mxu0
    %v187 = vadd.f32 %v179, 0.0
    %v188 = vadd.f32 %v184, 0.0
    %v189 = vmul.f32 %v179, %v179
    %v190 = vmul.f32 %v184, %v184
    %v191 = vadd.f32 %v189, %v190
    %v192 = vrot.slane %v191, 4
    %v193 = vadd.f32 %v191, %v192
    %v194 = vrot.slane %v193, 2
    %v195 = vadd.f32 %v193, %v194
    %v196 = vrot.slane %v195, 1
    %v197 = vadd.f32 %v195, %v196
    %v198 = vadd.f32 %v197, 0.0
    %v199 = vld [vmem:[%s0 + $0x1] sm:$0x1]
    %v200 = vlaneseq
    %v201 = vshrl.u32 %v200, 7
    %v202 = vsub.s32 0, %v201
    %v203 = vrot.slane %v199, %v202
    %vm204 = vcmp.eq.s32.totalorder %v44, %v203
    %vm205 = vcmp.eq.s32.totalorder %v45, %v203
    %vm206 = vcmp.eq.s32.totalorder %v46, %v203
    %vm207 = vcmp.eq.s32.totalorder %v47, %v203
    %vm208 = vcmp.eq.s32.totalorder %v48, %v203
    %vm209 = vcmp.eq.s32.totalorder %v49, %v203
    %vm210 = vcmp.eq.s32.totalorder %v50, %v203
    %vm211 = vcmp.eq.s32.totalorder %v51, %v203
    %vm212 = vcmp.eq.s32.totalorder %v52, %v203
    %vm213 = vcmp.eq.s32.totalorder %v53, %v203
    %vm214 = vcmp.eq.s32.totalorder %v54, %v203
    %vm215 = vcmp.eq.s32.totalorder %v55, %v203
    %vm216 = vcmp.eq.s32.totalorder %v56, %v203
    %v217 = vsel %vm204, 1, 0
    %v218 = vsel %vm205, 1, 0
    %v219 = vsel %vm206, 1, 0
    %v220 = vsel %vm207, 1, 0
    %v221 = vsel %vm208, 1, 0
    %v222 = vsel %vm209, 1, 0
    %v223 = vsel %vm210, 1, 0
    %v224 = vsel %vm211, 1, 0
    %v225 = vsel %vm212, 1, 0
    %v226 = vsel %vm213, 1, 0
    %v227 = vsel %vm214, 1, 0
    %v228 = vsel %vm215, 1, 0
    %v229 = vsel %vm216, 1, 0
    %v230 = vcvt.s32.f32 %v217
    %v231 = vcvt.s32.f32 %v218
    %v232 = vcvt.s32.f32 %v219
    %v233 = vcvt.s32.f32 %v220
    %v234 = vcvt.s32.f32 %v221
    %v235 = vcvt.s32.f32 %v222
    %v236 = vcvt.s32.f32 %v223
    %v237 = vcvt.s32.f32 %v224
    %v238 = vcvt.s32.f32 %v225
    %v239 = vcvt.s32.f32 %v226
    %v240 = vcvt.s32.f32 %v227
    %v241 = vcvt.s32.f32 %v228
    %v242 = vcvt.s32.f32 %v229
    %v244 = vsel %vm108, %v242, 0
    %246 = vmatprep.subr.mxu0 0.0
    %247 = vmatpush1.msra.mxu0 0.0
    %248 = vmatprep.subr.mxu0 0.0
    %249 = vmatpush1.msra.mxu0 0.0
    %250 = vmatprep.subr.mxu0 0.0
    %251 = vmatpush1.msra.mxu0 0.0
    %252 = vmatprep.subr.mxu0 0.0
    %253 = vmatpush1.msra.mxu0 %v244
    %254 = vmatprep.subr.mxu0 0.0
    %255 = vmatpush1.msra.mxu0 %v241
    %256 = vmatprep.subr.mxu0 0.0
    %257 = vmatpush1.msra.mxu0 %v240
    %258 = vmatprep.subr.mxu0 0.0
    %259 = vmatpush1.msra.mxu0 %v239
    %260 = vmatprep.subr.mxu0 0.0
    %261 = vmatpush1.msra.mxu0 %v238
    %262 = vmatprep.subr.mxu0 0.0
    %263 = vmatpush1.msra.mxu0 %v237
    %264 = vmatprep.subr.mxu0 0.0
    %265 = vmatpush1.msra.mxu0 %v236
    %266 = vmatprep.subr.mxu0 0.0
    %267 = vmatpush1.msra.mxu0 %v235
    %268 = vmatprep.subr.mxu0 0.0
    %269 = vmatpush1.msra.mxu0 %v234
    %270 = vmatprep.subr.mxu0 0.0
    %271 = vmatpush1.msra.mxu0 %v233
    %272 = vmatprep.subr.mxu0 0.0
    %273 = vmatpush1.msra.mxu0 %v232
    %274 = vmatprep.subr.mxu0 0.0
    %275 = vmatpush1.msra.mxu0 %v231
    %276 = vmatprep.subr.mxu0 0.0
    %277 = vmatpush1.msra.mxu0 %v230
    %278 = vmatprep.subr.mxu0 0.0
    %279 = vmatpush2.msra.mxu0 0.0
    %280 = vmatprep.subr.mxu0 0.0
    %281 = vmatpush2.msra.mxu0 0.0
    %282 = vmatprep.subr.mxu0 0.0
    %283 = vmatpush2.msra.mxu0 0.0
    %284 = vmatprep.subr.mxu0 0.0
    %285 = vmatpush2.msra.mxu0 0.0
    %286 = vmatprep.subr.mxu0 0.0
    %287 = vmatpush2.msra.mxu0 0.0
    %288 = vmatprep.subr.mxu0 0.0
    %289 = vmatpush2.msra.mxu0 0.0
    %290 = vmatprep.subr.mxu0 0.0
    %291 = vmatpush2.msra.mxu0 0.0
    %292 = vmatprep.subr.mxu0 0.0
    %293 = vmatpush2.msra.mxu0 0.0
    %294 = vmatprep.subr.mxu0 0.0
    %295 = vmatpush2.msra.mxu0 0.0
    %296 = vmatprep.subr.mxu0 0.0
    %297 = vmatpush2.msra.mxu0 0.0
    %298 = vmatprep.subr.mxu0 0.0
    %299 = vmatpush2.msra.mxu0 0.0
    %300 = vmatprep.subr.mxu0 0.0
    %301 = vmatpush2.msra.mxu0 0.0
    %302 = vmatprep.subr.mxu0 0.0
    %303 = vmatpush2.msra.mxu0 0.0
    %304 = vmatprep.subr.mxu0 0.0
    %305 = vmatpush2.msra.mxu0 0.0
    %306 = vmatprep.subr.mxu0 0.0
    %307 = vmatpush2.msra.mxu0 0.0
    %308 = vmatprep.subr.mxu0 0.0
    %309 = vmatpush2.msra.mxu0 0.0
    %310 = vmatprep.mubr.f32.mxu0 0.0
    %311 = vmatmul.mubr.f32.gmra.mxu0 %v103
    %v312 = vpop.f32.mrf.mxu0
    %v313 = vadd.f32 0.0, %v312
    %v314 = vpop.f32.mrf.mxu0
    %315 = vmatprep.mubr.f32.mxu0 0.0
    %316 = vmatmul.mubr.f32.gmra.mxu0 %v106
    %v317 = vpop.f32.mrf.mxu0
    %v318 = vadd.f32 0.0, %v317
    %v319 = vpop.f32.mrf.mxu0
    %320 = vdwg.mxu0
    %v322 = vsel %vm101, %v42, 0
    %324 = vmatprep.subr.mxu0 0.0
    %325 = vmatpush1.msra.mxu0 0.0
    %326 = vmatprep.subr.mxu0 0.0
    %327 = vmatpush1.msra.mxu0 0.0
    %328 = vmatprep.subr.mxu0 0.0
    %329 = vmatpush1.msra.mxu0 0.0
    %330 = vmatprep.subr.mxu0 0.0
    %331 = vmatpush1.msra.mxu0 %v244
    %332 = vmatprep.subr.mxu0 0.0
    %333 = vmatpush1.msra.mxu0 %v241
    %334 = vmatprep.subr.mxu0 0.0
    %335 = vmatpush1.msra.mxu0 %v240
    %336 = vmatprep.subr.mxu0 0.0
    %337 = vmatpush1.msra.mxu0 %v239
    %338 = vmatprep.subr.mxu0 0.0
    %339 = vmatpush1.msra.mxu0 %v238
    %340 = vmatprep.subr.mxu0 0.0
    %341 = vmatpush1.msra.mxu0 %v237
    %342 = vmatprep.subr.mxu0 0.0
    %343 = vmatpush1.msra.mxu0 %v236
    %344 = vmatprep.subr.mxu0 0.0
    %345 = vmatpush1.msra.mxu0 %v235
    %346 = vmatprep.subr.mxu0 0.0
    %347 = vmatpush1.msra.mxu0 %v234
    %348 = vmatprep.subr.mxu0 0.0
    %349 = vmatpush1.msra.mxu0 %v233
    %350 = vmatprep.subr.mxu0 0.0
    %351 = vmatpush1.msra.mxu0 %v232
    %352 = vmatprep.subr.mxu0 0.0
    %353 = vmatpush1.msra.mxu0 %v231
    %354 = vmatprep.subr.mxu0 0.0
    %355 = vmatpush1.msra.mxu0 %v230
    %356 = vmatprep.subr.mxu0 0.0
    %357 = vmatpush2.msra.mxu0 0.0
    %358 = vmatprep.subr.mxu0 0.0
    %359 = vmatpush2.msra.mxu0 0.0
    %360 = vmatprep.subr.mxu0 0.0
    %361 = vmatpush2.msra.mxu0 0.0
    %362 = vmatprep.subr.mxu0 0.0
    %363 = vmatpush2.msra.mxu0 0.0
    %364 = vmatprep.subr.mxu0 0.0
    %365 = vmatpush2.msra.mxu0 0.0
    %366 = vmatprep.subr.mxu0 0.0
    %367 = vmatpush2.msra.mxu0 0.0
    %368 = vmatprep.subr.mxu0 0.0
    %369 = vmatpush2.msra.mxu0 0.0
    %370 = vmatprep.subr.mxu0 0.0
    %371 = vmatpush2.msra.mxu0 0.0
    %372 = vmatprep.subr.mxu0 0.0
    %373 = vmatpush2.msra.mxu0 0.0
    %374 = vmatprep.subr.mxu0 0.0
    %375 = vmatpush2.msra.mxu0 0.0
    %376 = vmatprep.subr.mxu0 0.0
    %377 = vmatpush2.msra.mxu0 0.0
    %378 = vmatprep.subr.mxu0 0.0
    %379 = vmatpush2.msra.mxu0 0.0
    %380 = vmatprep.subr.mxu0 0.0
    %381 = vmatpush2.msra.mxu0 0.0
    %382 = vmatprep.subr.mxu0 0.0
    %383 = vmatpush2.msra.mxu0 0.0
    %384 = vmatprep.subr.mxu0 0.0
    %385 = vmatpush2.msra.mxu0 0.0
    %386 = vmatprep.subr.mxu0 0.0
    %387 = vmatpush2.msra.mxu0 0.0
    %388 = vmatprep.mubr.f32.mxu0 0.0
    %389 = vmatmul.mubr.f32.gmra.mxu0 %v322
    %v390 = vpop.f32.mrf.mxu0
    %v391 = vadd.f32 0.0, %v390
    %v392 = vpop.f32.mrf.mxu0
    %393 = vdwg.mxu0
    %394 = vmatprep.subr.mxu0 0.0
    %395 = vmatpush1.msra.mxu0 0.0
    %396 = vmatprep.subr.mxu0 0.0
    %397 = vmatpush1.msra.mxu0 0.0
    %398 = vmatprep.subr.mxu0 0.0
    %399 = vmatpush1.msra.mxu0 0.0
    %400 = vmatprep.subr.mxu0 0.0
    %401 = vmatpush1.msra.mxu0 %v110
    %402 = vmatprep.subr.mxu0 0.0
    %403 = vmatpush1.msra.mxu0 %v99
    %404 = vmatprep.subr.mxu0 0.0
    %405 = vmatpush1.msra.mxu0 %v98
    %406 = vmatprep.subr.mxu0 0.0
    %407 = vmatpush1.msra.mxu0 %v97
    %408 = vmatprep.subr.mxu0 0.0
    %409 = vmatpush1.msra.mxu0 %v96
    %410 = vmatprep.subr.mxu0 0.0
    %411 = vmatpush1.msra.mxu0 %v95
    %412 = vmatprep.subr.mxu0 0.0
    %413 = vmatpush1.msra.mxu0 %v94
    %414 = vmatprep.subr.mxu0 0.0
    %415 = vmatpush1.msra.mxu0 %v93
    %416 = vmatprep.subr.mxu0 0.0
    %417 = vmatpush1.msra.mxu0 %v92
    %418 = vmatprep.subr.mxu0 0.0
    %419 = vmatpush1.msra.mxu0 %v91
    %420 = vmatprep.subr.mxu0 0.0
    %421 = vmatpush1.msra.mxu0 %v90
    %422 = vmatprep.subr.mxu0 0.0
    %423 = vmatpush1.msra.mxu0 %v89
    %424 = vmatprep.subr.mxu0 0.0
    %425 = vmatpush1.msra.mxu0 %v88
    %426 = vmatprep.subr.mxu0 0.0
    %427 = vmatpush2.msra.mxu0 0.0
    %428 = vmatprep.subr.mxu0 0.0
    %429 = vmatpush2.msra.mxu0 0.0
    %430 = vmatprep.subr.mxu0 0.0
    %431 = vmatpush2.msra.mxu0 0.0
    %432 = vmatprep.subr.mxu0 0.0
    %433 = vmatpush2.msra.mxu0 0.0
    %434 = vmatprep.subr.mxu0 0.0
    %435 = vmatpush2.msra.mxu0 0.0
    %436 = vmatprep.subr.mxu0 0.0
    %437 = vmatpush2.msra.mxu0 0.0
    %438 = vmatprep.subr.mxu0 0.0
    %439 = vmatpush2.msra.mxu0 0.0
    %440 = vmatprep.subr.mxu0 0.0
    %441 = vmatpush2.msra.mxu0 0.0
    %442 = vmatprep.subr.mxu0 0.0
    %443 = vmatpush2.msra.mxu0 0.0
    %444 = vmatprep.subr.mxu0 0.0
    %445 = vmatpush2.msra.mxu0 0.0
    %446 = vmatprep.subr.mxu0 0.0
    %447 = vmatpush2.msra.mxu0 0.0
    %448 = vmatprep.subr.mxu0 0.0
    %449 = vmatpush2.msra.mxu0 0.0
    %450 = vmatprep.subr.mxu0 0.0
    %451 = vmatpush2.msra.mxu0 0.0
    %452 = vmatprep.subr.mxu0 0.0
    %453 = vmatpush2.msra.mxu0 0.0
    %454 = vmatprep.subr.mxu0 0.0
    %455 = vmatpush2.msra.mxu0 0.0
    %456 = vmatprep.subr.mxu0 0.0
    %457 = vmatpush2.msra.mxu0 0.0
    %458 = vmatprep.mubr.f32.mxu0 0.0
    %459 = vmatmul.mubr.f32.gmra.mxu0 %v322
    %v460 = vpop.f32.mrf.mxu0
    %v461 = vadd.f32 %v391, %v460
    %v462 = vpop.f32.mrf.mxu0
    %463 = vdwg.mxu0
    %v464 = vadd.f32 %v187, %v313
    %v465 = vadd.f32 %v188, %v318
    %v466 = vmul.f32 %v313, %v313
    %v467 = vmul.f32 %v318, %v318
    %v468 = vadd.f32 %v466, %v467
    %v469 = vrot.slane %v468, 4
    %v470 = vadd.f32 %v468, %v469
    %v471 = vrot.slane %v470, 2
    %v472 = vadd.f32 %v470, %v471
    %v473 = vrot.slane %v472, 1
    %v474 = vadd.f32 %v472, %v473
    %v475 = vadd.f32 %v198, %v474
    %v476 = vld [vmem:[%s0 + $0x2] sm:$0x1]
    %v477 = vlaneseq
    %v478 = vshrl.u32 %v477, 7
    %v479 = vsub.s32 0, %v478
    %v480 = vrot.slane %v476, %v479
    %vm481 = vcmp.eq.s32.totalorder %v44, %v480
    %vm482 = vcmp.eq.s32.totalorder %v45, %v480
    %vm483 = vcmp.eq.s32.totalorder %v46, %v480
    %vm484 = vcmp.eq.s32.totalorder %v47, %v480
    %vm485 = vcmp.eq.s32.totalorder %v48, %v480
    %vm486 = vcmp.eq.s32.totalorder %v49, %v480
    %vm487 = vcmp.eq.s32.totalorder %v50, %v480
    %vm488 = vcmp.eq.s32.totalorder %v51, %v480
    %vm489 = vcmp.eq.s32.totalorder %v52, %v480
    %vm490 = vcmp.eq.s32.totalorder %v53, %v480
    %vm491 = vcmp.eq.s32.totalorder %v54, %v480
    %vm492 = vcmp.eq.s32.totalorder %v55, %v480
    %vm493 = vcmp.eq.s32.totalorder %v56, %v480
    %v494 = vsel %vm481, 1, 0
    %v495 = vsel %vm482, 1, 0
    %v496 = vsel %vm483, 1, 0
    %v497 = vsel %vm484, 1, 0
    %v498 = vsel %vm485, 1, 0
    %v499 = vsel %vm486, 1, 0
    %v500 = vsel %vm487, 1, 0
    %v501 = vsel %vm488, 1, 0
    %v502 = vsel %vm489, 1, 0
    %v503 = vsel %vm490, 1, 0
    %v504 = vsel %vm491, 1, 0
    %v505 = vsel %vm492, 1, 0
    %v506 = vsel %vm493, 1, 0
    %v507 = vcvt.s32.f32 %v494
    %v508 = vcvt.s32.f32 %v495
    %v509 = vcvt.s32.f32 %v496
    %v510 = vcvt.s32.f32 %v497
    %v511 = vcvt.s32.f32 %v498
    %v512 = vcvt.s32.f32 %v499
    %v513 = vcvt.s32.f32 %v500
    %v514 = vcvt.s32.f32 %v501
    %v515 = vcvt.s32.f32 %v502
    %v516 = vcvt.s32.f32 %v503
    %v517 = vcvt.s32.f32 %v504
    %v518 = vcvt.s32.f32 %v505
    %v519 = vcvt.s32.f32 %v506
    %v521 = vsel %vm108, %v519, 0
    %523 = vmatprep.subr.mxu0 0.0
    %524 = vmatpush1.msra.mxu0 0.0
    %525 = vmatprep.subr.mxu0 0.0
    %526 = vmatpush1.msra.mxu0 0.0
    %527 = vmatprep.subr.mxu0 0.0
    %528 = vmatpush1.msra.mxu0 0.0
    %529 = vmatprep.subr.mxu0 0.0
    %530 = vmatpush1.msra.mxu0 %v521
    %531 = vmatprep.subr.mxu0 0.0
    %532 = vmatpush1.msra.mxu0 %v518
    %533 = vmatprep.subr.mxu0 0.0
    %534 = vmatpush1.msra.mxu0 %v517
    %535 = vmatprep.subr.mxu0 0.0
    %536 = vmatpush1.msra.mxu0 %v516
    %537 = vmatprep.subr.mxu0 0.0
    %538 = vmatpush1.msra.mxu0 %v515
    %539 = vmatprep.subr.mxu0 0.0
    %540 = vmatpush1.msra.mxu0 %v514
    %541 = vmatprep.subr.mxu0 0.0
    %542 = vmatpush1.msra.mxu0 %v513
    %543 = vmatprep.subr.mxu0 0.0
    %544 = vmatpush1.msra.mxu0 %v512
    %545 = vmatprep.subr.mxu0 0.0
    %546 = vmatpush1.msra.mxu0 %v511
    %547 = vmatprep.subr.mxu0 0.0
    %548 = vmatpush1.msra.mxu0 %v510
    %549 = vmatprep.subr.mxu0 0.0
    %550 = vmatpush1.msra.mxu0 %v509
    %551 = vmatprep.subr.mxu0 0.0
    %552 = vmatpush1.msra.mxu0 %v508
    %553 = vmatprep.subr.mxu0 0.0
    %554 = vmatpush1.msra.mxu0 %v507
    %555 = vmatprep.subr.mxu0 0.0
    %556 = vmatpush2.msra.mxu0 0.0
    %557 = vmatprep.subr.mxu0 0.0
    %558 = vmatpush2.msra.mxu0 0.0
    %559 = vmatprep.subr.mxu0 0.0
    %560 = vmatpush2.msra.mxu0 0.0
    %561 = vmatprep.subr.mxu0 0.0
    %562 = vmatpush2.msra.mxu0 0.0
    %563 = vmatprep.subr.mxu0 0.0
    %564 = vmatpush2.msra.mxu0 0.0
    %565 = vmatprep.subr.mxu0 0.0
    %566 = vmatpush2.msra.mxu0 0.0
    %567 = vmatprep.subr.mxu0 0.0
    %568 = vmatpush2.msra.mxu0 0.0
    %569 = vmatprep.subr.mxu0 0.0
    %570 = vmatpush2.msra.mxu0 0.0
    %571 = vmatprep.subr.mxu0 0.0
    %572 = vmatpush2.msra.mxu0 0.0
    %573 = vmatprep.subr.mxu0 0.0
    %574 = vmatpush2.msra.mxu0 0.0
    %575 = vmatprep.subr.mxu0 0.0
    %576 = vmatpush2.msra.mxu0 0.0
    %577 = vmatprep.subr.mxu0 0.0
    %578 = vmatpush2.msra.mxu0 0.0
    %579 = vmatprep.subr.mxu0 0.0
    %580 = vmatpush2.msra.mxu0 0.0
    %581 = vmatprep.subr.mxu0 0.0
    %582 = vmatpush2.msra.mxu0 0.0
    %583 = vmatprep.subr.mxu0 0.0
    %584 = vmatpush2.msra.mxu0 0.0
    %585 = vmatprep.subr.mxu0 0.0
    %586 = vmatpush2.msra.mxu0 0.0
    %587 = vmatprep.mubr.f32.mxu0 0.0
    %588 = vmatmul.mubr.f32.gmra.mxu0 %v103
    %v589 = vpop.f32.mrf.mxu0
    %v590 = vadd.f32 0.0, %v589
    %v591 = vpop.f32.mrf.mxu0
    %592 = vmatprep.mubr.f32.mxu0 0.0
    %593 = vmatmul.mubr.f32.gmra.mxu0 %v106
    %v594 = vpop.f32.mrf.mxu0
    %v595 = vadd.f32 0.0, %v594
    %v596 = vpop.f32.mrf.mxu0
    %597 = vdwg.mxu0
    %598 = vmatprep.subr.mxu0 0.0
    %599 = vmatpush1.msra.mxu0 0.0
    %600 = vmatprep.subr.mxu0 0.0
    %601 = vmatpush1.msra.mxu0 0.0
    %602 = vmatprep.subr.mxu0 0.0
    %603 = vmatpush1.msra.mxu0 0.0
    %604 = vmatprep.subr.mxu0 0.0
    %605 = vmatpush1.msra.mxu0 %v521
    %606 = vmatprep.subr.mxu0 0.0
    %607 = vmatpush1.msra.mxu0 %v518
    %608 = vmatprep.subr.mxu0 0.0
    %609 = vmatpush1.msra.mxu0 %v517
    %610 = vmatprep.subr.mxu0 0.0
    %611 = vmatpush1.msra.mxu0 %v516
    %612 = vmatprep.subr.mxu0 0.0
    %613 = vmatpush1.msra.mxu0 %v515
    %614 = vmatprep.subr.mxu0 0.0
    %615 = vmatpush1.msra.mxu0 %v514
    %616 = vmatprep.subr.mxu0 0.0
    %617 = vmatpush1.msra.mxu0 %v513
    %618 = vmatprep.subr.mxu0 0.0
    %619 = vmatpush1.msra.mxu0 %v512
    %620 = vmatprep.subr.mxu0 0.0
    %621 = vmatpush1.msra.mxu0 %v511
    %622 = vmatprep.subr.mxu0 0.0
    %623 = vmatpush1.msra.mxu0 %v510
    %624 = vmatprep.subr.mxu0 0.0
    %625 = vmatpush1.msra.mxu0 %v509
    %626 = vmatprep.subr.mxu0 0.0
    %627 = vmatpush1.msra.mxu0 %v508
    %628 = vmatprep.subr.mxu0 0.0
    %629 = vmatpush1.msra.mxu0 %v507
    %630 = vmatprep.subr.mxu0 0.0
    %631 = vmatpush2.msra.mxu0 0.0
    %632 = vmatprep.subr.mxu0 0.0
    %633 = vmatpush2.msra.mxu0 0.0
    %634 = vmatprep.subr.mxu0 0.0
    %635 = vmatpush2.msra.mxu0 0.0
    %636 = vmatprep.subr.mxu0 0.0
    %637 = vmatpush2.msra.mxu0 0.0
    %638 = vmatprep.subr.mxu0 0.0
    %639 = vmatpush2.msra.mxu0 0.0
    %640 = vmatprep.subr.mxu0 0.0
    %641 = vmatpush2.msra.mxu0 0.0
    %642 = vmatprep.subr.mxu0 0.0
    %643 = vmatpush2.msra.mxu0 0.0
    %644 = vmatprep.subr.mxu0 0.0
    %645 = vmatpush2.msra.mxu0 0.0
    %646 = vmatprep.subr.mxu0 0.0
    %647 = vmatpush2.msra.mxu0 0.0
    %648 = vmatprep.subr.mxu0 0.0
    %649 = vmatpush2.msra.mxu0 0.0
    %650 = vmatprep.subr.mxu0 0.0
    %651 = vmatpush2.msra.mxu0 0.0
    %652 = vmatprep.subr.mxu0 0.0
    %653 = vmatpush2.msra.mxu0 0.0
    %654 = vmatprep.subr.mxu0 0.0
    %655 = vmatpush2.msra.mxu0 0.0
    %656 = vmatprep.subr.mxu0 0.0
    %657 = vmatpush2.msra.mxu0 0.0
    %658 = vmatprep.subr.mxu0 0.0
    %659 = vmatpush2.msra.mxu0 0.0
    %660 = vmatprep.subr.mxu0 0.0
    %661 = vmatpush2.msra.mxu0 0.0
    %662 = vmatprep.mubr.f32.mxu0 0.0
    %663 = vmatmul.mubr.f32.gmra.mxu0 %v322
    %v664 = vpop.f32.mrf.mxu0
    %v665 = vadd.f32 0.0, %v664
    %v666 = vpop.f32.mrf.mxu0
    %667 = vdwg.mxu0
    %v668 = vadd.f32 %v461, %v665
    %v669 = vadd.f32 %v464, %v590
    %v670 = vadd.f32 %v465, %v595
    %v671 = vmul.f32 %v590, %v590
    %v672 = vmul.f32 %v595, %v595
    %v673 = vadd.f32 %v671, %v672
    %v674 = vrot.slane %v673, 4
    %v675 = vadd.f32 %v673, %v674
    %v676 = vrot.slane %v675, 2
    %v677 = vadd.f32 %v675, %v676
    %v678 = vrot.slane %v677, 1
    %v679 = vadd.f32 %v677, %v678
    %v680 = vadd.f32 %v475, %v679
    %v681 = vld [vmem:[%s0 + $0x3] sm:$0x1]
    %v682 = vlaneseq
    %v683 = vshrl.u32 %v682, 7
    %v684 = vsub.s32 0, %v683
    %v685 = vrot.slane %v681, %v684
    %vm686 = vcmp.eq.s32.totalorder %v44, %v685
    %vm687 = vcmp.eq.s32.totalorder %v45, %v685
    %vm688 = vcmp.eq.s32.totalorder %v46, %v685
    %vm689 = vcmp.eq.s32.totalorder %v47, %v685
    %vm690 = vcmp.eq.s32.totalorder %v48, %v685
    %vm691 = vcmp.eq.s32.totalorder %v49, %v685
    %vm692 = vcmp.eq.s32.totalorder %v50, %v685
    %vm693 = vcmp.eq.s32.totalorder %v51, %v685
    %vm694 = vcmp.eq.s32.totalorder %v52, %v685
    %vm695 = vcmp.eq.s32.totalorder %v53, %v685
    %vm696 = vcmp.eq.s32.totalorder %v54, %v685
    %vm697 = vcmp.eq.s32.totalorder %v55, %v685
    %vm698 = vcmp.eq.s32.totalorder %v56, %v685
    %v699 = vsel %vm686, 1, 0
    %v700 = vsel %vm687, 1, 0
    %v701 = vsel %vm688, 1, 0
    %v702 = vsel %vm689, 1, 0
    %v703 = vsel %vm690, 1, 0
    %v704 = vsel %vm691, 1, 0
    %v705 = vsel %vm692, 1, 0
    %v706 = vsel %vm693, 1, 0
    %v707 = vsel %vm694, 1, 0
    %v708 = vsel %vm695, 1, 0
    %v709 = vsel %vm696, 1, 0
    %v710 = vsel %vm697, 1, 0
    %v711 = vsel %vm698, 1, 0
    %v712 = vcvt.s32.f32 %v699
    %v713 = vcvt.s32.f32 %v700
    %v714 = vcvt.s32.f32 %v701
    %v715 = vcvt.s32.f32 %v702
    %v716 = vcvt.s32.f32 %v703
    %v717 = vcvt.s32.f32 %v704
    %v718 = vcvt.s32.f32 %v705
    %v719 = vcvt.s32.f32 %v706
    %v720 = vcvt.s32.f32 %v707
    %v721 = vcvt.s32.f32 %v708
    %v722 = vcvt.s32.f32 %v709
    %v723 = vcvt.s32.f32 %v710
    %v724 = vcvt.s32.f32 %v711
    %v726 = vsel %vm108, %v724, 0
    %728 = vmatprep.subr.mxu0 0.0
    %729 = vmatpush1.msra.mxu0 0.0
    %730 = vmatprep.subr.mxu0 0.0
    %731 = vmatpush1.msra.mxu0 0.0
    %732 = vmatprep.subr.mxu0 0.0
    %733 = vmatpush1.msra.mxu0 0.0
    %734 = vmatprep.subr.mxu0 0.0
    %735 = vmatpush1.msra.mxu0 %v726
    %736 = vmatprep.subr.mxu0 0.0
    %737 = vmatpush1.msra.mxu0 %v723
    %738 = vmatprep.subr.mxu0 0.0
    %739 = vmatpush1.msra.mxu0 %v722
    %740 = vmatprep.subr.mxu0 0.0
    %741 = vmatpush1.msra.mxu0 %v721
    %742 = vmatprep.subr.mxu0 0.0
    %743 = vmatpush1.msra.mxu0 %v720
    %744 = vmatprep.subr.mxu0 0.0
    %745 = vmatpush1.msra.mxu0 %v719
    %746 = vmatprep.subr.mxu0 0.0
    %747 = vmatpush1.msra.mxu0 %v718
    %748 = vmatprep.subr.mxu0 0.0
    %749 = vmatpush1.msra.mxu0 %v717
    %750 = vmatprep.subr.mxu0 0.0
    %751 = vmatpush1.msra.mxu0 %v716
    %752 = vmatprep.subr.mxu0 0.0
    %753 = vmatpush1.msra.mxu0 %v715
    %754 = vmatprep.subr.mxu0 0.0
    %755 = vmatpush1.msra.mxu0 %v714
    %756 = vmatprep.subr.mxu0 0.0
    %757 = vmatpush1.msra.mxu0 %v713
    %758 = vmatprep.subr.mxu0 0.0
    %759 = vmatpush1.msra.mxu0 %v712
    %760 = vmatprep.subr.mxu0 0.0
    %761 = vmatpush2.msra.mxu0 0.0
    %762 = vmatprep.subr.mxu0 0.0
    %763 = vmatpush2.msra.mxu0 0.0
    %764 = vmatprep.subr.mxu0 0.0
    %765 = vmatpush2.msra.mxu0 0.0
    %766 = vmatprep.subr.mxu0 0.0
    %767 = vmatpush2.msra.mxu0 0.0
    %768 = vmatprep.subr.mxu0 0.0
    %769 = vmatpush2.msra.mxu0 0.0
    %770 = vmatprep.subr.mxu0 0.0
    %771 = vmatpush2.msra.mxu0 0.0
    %772 = vmatprep.subr.mxu0 0.0
    %773 = vmatpush2.msra.mxu0 0.0
    %774 = vmatprep.subr.mxu0 0.0
    %775 = vmatpush2.msra.mxu0 0.0
    %776 = vmatprep.subr.mxu0 0.0
    %777 = vmatpush2.msra.mxu0 0.0
    %778 = vmatprep.subr.mxu0 0.0
    %779 = vmatpush2.msra.mxu0 0.0
    %780 = vmatprep.subr.mxu0 0.0
    %781 = vmatpush2.msra.mxu0 0.0
    %782 = vmatprep.subr.mxu0 0.0
    %783 = vmatpush2.msra.mxu0 0.0
    %784 = vmatprep.subr.mxu0 0.0
    %785 = vmatpush2.msra.mxu0 0.0
    %786 = vmatprep.subr.mxu0 0.0
    %787 = vmatpush2.msra.mxu0 0.0
    %788 = vmatprep.subr.mxu0 0.0
    %789 = vmatpush2.msra.mxu0 0.0
    %790 = vmatprep.subr.mxu0 0.0
    %791 = vmatpush2.msra.mxu0 0.0
    %792 = vmatprep.mubr.f32.mxu0 0.0
    %793 = vmatmul.mubr.f32.gmra.mxu0 %v103
    %v794 = vpop.f32.mrf.mxu0
    %v795 = vadd.f32 0.0, %v794
    %v796 = vpop.f32.mrf.mxu0
    %797 = vmatprep.mubr.f32.mxu0 0.0
    %798 = vmatmul.mubr.f32.gmra.mxu0 %v106
    %v799 = vpop.f32.mrf.mxu0
    %v800 = vadd.f32 0.0, %v799
    %v801 = vpop.f32.mrf.mxu0
    %802 = vdwg.mxu0
    %803 = vmatprep.subr.mxu0 0.0
    %804 = vmatpush1.msra.mxu0 0.0
    %805 = vmatprep.subr.mxu0 0.0
    %806 = vmatpush1.msra.mxu0 0.0
    %807 = vmatprep.subr.mxu0 0.0
    %808 = vmatpush1.msra.mxu0 0.0
    %809 = vmatprep.subr.mxu0 0.0
    %810 = vmatpush1.msra.mxu0 %v726
    %811 = vmatprep.subr.mxu0 0.0
    %812 = vmatpush1.msra.mxu0 %v723
    %813 = vmatprep.subr.mxu0 0.0
    %814 = vmatpush1.msra.mxu0 %v722
    %815 = vmatprep.subr.mxu0 0.0
    %816 = vmatpush1.msra.mxu0 %v721
    %817 = vmatprep.subr.mxu0 0.0
    %818 = vmatpush1.msra.mxu0 %v720
    %819 = vmatprep.subr.mxu0 0.0
    %820 = vmatpush1.msra.mxu0 %v719
    %821 = vmatprep.subr.mxu0 0.0
    %822 = vmatpush1.msra.mxu0 %v718
    %823 = vmatprep.subr.mxu0 0.0
    %824 = vmatpush1.msra.mxu0 %v717
    %825 = vmatprep.subr.mxu0 0.0
    %826 = vmatpush1.msra.mxu0 %v716
    %827 = vmatprep.subr.mxu0 0.0
    %828 = vmatpush1.msra.mxu0 %v715
    %829 = vmatprep.subr.mxu0 0.0
    %830 = vmatpush1.msra.mxu0 %v714
    %831 = vmatprep.subr.mxu0 0.0
    %832 = vmatpush1.msra.mxu0 %v713
    %833 = vmatprep.subr.mxu0 0.0
    %834 = vmatpush1.msra.mxu0 %v712
    %835 = vmatprep.subr.mxu0 0.0
    %836 = vmatpush2.msra.mxu0 0.0
    %837 = vmatprep.subr.mxu0 0.0
    %838 = vmatpush2.msra.mxu0 0.0
    %839 = vmatprep.subr.mxu0 0.0
    %840 = vmatpush2.msra.mxu0 0.0
    %841 = vmatprep.subr.mxu0 0.0
    %842 = vmatpush2.msra.mxu0 0.0
    %843 = vmatprep.subr.mxu0 0.0
    %844 = vmatpush2.msra.mxu0 0.0
    %845 = vmatprep.subr.mxu0 0.0
    %846 = vmatpush2.msra.mxu0 0.0
    %847 = vmatprep.subr.mxu0 0.0
    %848 = vmatpush2.msra.mxu0 0.0
    %849 = vmatprep.subr.mxu0 0.0
    %850 = vmatpush2.msra.mxu0 0.0
    %851 = vmatprep.subr.mxu0 0.0
    %852 = vmatpush2.msra.mxu0 0.0
    %853 = vmatprep.subr.mxu0 0.0
    %854 = vmatpush2.msra.mxu0 0.0
    %855 = vmatprep.subr.mxu0 0.0
    %856 = vmatpush2.msra.mxu0 0.0
    %857 = vmatprep.subr.mxu0 0.0
    %858 = vmatpush2.msra.mxu0 0.0
    %859 = vmatprep.subr.mxu0 0.0
    %860 = vmatpush2.msra.mxu0 0.0
    %861 = vmatprep.subr.mxu0 0.0
    %862 = vmatpush2.msra.mxu0 0.0
    %863 = vmatprep.subr.mxu0 0.0
    %864 = vmatpush2.msra.mxu0 0.0
    %865 = vmatprep.subr.mxu0 0.0
    %866 = vmatpush2.msra.mxu0 0.0
    %867 = vmatprep.mubr.f32.mxu0 0.0
    %868 = vmatmul.mubr.f32.gmra.mxu0 %v322
    %v869 = vpop.f32.mrf.mxu0
    %v870 = vadd.f32 0.0, %v869
    %v871 = vpop.f32.mrf.mxu0
    %872 = vdwg.mxu0
    %v873 = vadd.f32 %v668, %v870
    %v874 = vadd.f32 %v669, %v795
    %v875 = vadd.f32 %v670, %v800
    %v876 = vmul.f32 %v795, %v795
    %v877 = vmul.f32 %v800, %v800
    %v878 = vadd.f32 %v876, %v877
    %v879 = vrot.slane %v878, 4
    %v880 = vadd.f32 %v878, %v879
    %v881 = vrot.slane %v880, 2
    %v882 = vadd.f32 %v880, %v881
    %v883 = vrot.slane %v882, 1
    %v884 = vadd.f32 %v882, %v883
    %v885 = vadd.f32 %v680, %v884
    %v886 = vld [vmem:[#allocation3] sm:$0x1]
    %888 = vset.pattern.permute.xlu0 0
    %889 = vperm.xlu0 %888, %v886
    %v890 = vpop.permute.xlu0 %889
    %v892 = vlaneseq
    %v893 = vshrl.u32 %v892, 7
    %v894 = vsub.s32 0, %v893
    %v895 = vrot.slane %v890, %v894
    %v896 = vadd.f32 %v873, %v895
    %v897 = vmul.f32 %v874, %v874
    %v898 = vmul.f32 %v875, %v875
    %v899 = vadd.f32 %v897, %v898
    %v900 = vrot.slane %v899, 4
    %v901 = vadd.f32 %v899, %v900
    %v902 = vrot.slane %v901, 2
    %v903 = vadd.f32 %v901, %v902
    %v904 = vrot.slane %v903, 1
    %v905 = vadd.f32 %v903, %v904
    %v906 = vsub.f32 %v905, %v885
    %v907 = vmul.f32 %v906, 0.5
    %v908 = vld [vmem:[%s3] sm:$0xff]
    %v909 = vld [vmem:[%s3 + $0x8] sm:$0xff]
    %v910 = vld [vmem:[%s3 + $0x10] sm:$0xff]
    %v911 = vld [vmem:[%s3 + $0x18] sm:$0xff]
    %v912 = vld [vmem:[%s4] sm:$0xff]
    %v913 = vld [vmem:[%s4 + $0x8] sm:$0xff]
    %v914 = vld [vmem:[%s4 + $0x10] sm:$0xff]
    %v915 = vld [vmem:[%s4 + $0x18] sm:$0xff]
    %917 = vset.pattern.permute.xlu0 0
    %918 = vperm.xlu0 %917, %v912
    %v919 = vpop.permute.xlu0 %918
    %922 = vset.pattern.permute.xlu0 0
    %923 = vperm.xlu0 %922, %v913
    %v924 = vpop.permute.xlu0 %923
    %927 = vset.pattern.permute.xlu0 0
    %928 = vperm.xlu0 %927, %v914
    %v929 = vpop.permute.xlu0 %928
    %932 = vset.pattern.permute.xlu0 0
    %933 = vperm.xlu0 %932, %v915
    %v934 = vpop.permute.xlu0 %933
    %vm936 = vcmask 523264
    %v938 = vsel %vm936, %v908, 0
    %v941 = vsel %vm936, %v909, 0
    %v944 = vsel %vm936, %v910, 0
    %v947 = vsel %vm936, %v911, 0
    %949 = vmatprep.subr.mxu0 0.0
    %950 = vmatpush1.msra.mxu0 0.0
    %951 = vmatprep.subr.mxu0 0.0
    %952 = vmatpush1.msra.mxu0 0.0
    %953 = vmatprep.subr.mxu0 0.0
    %954 = vmatpush1.msra.mxu0 0.0
    %955 = vmatprep.subr.mxu0 0.0
    %956 = vmatpush1.msra.mxu0 0.0
    %957 = vmatprep.subr.mxu0 0.0
    %958 = vmatpush1.msra.mxu0 0.0
    %959 = vmatprep.subr.mxu0 0.0
    %960 = vmatpush1.msra.mxu0 0.0
    %961 = vmatprep.subr.mxu0 0.0
    %962 = vmatpush1.msra.mxu0 0.0
    %963 = vmatprep.subr.mxu0 0.0
    %964 = vmatpush1.msra.mxu0 0.0
    %965 = vmatprep.subr.mxu0 0.0
    %966 = vmatpush1.msra.mxu0 %v800
    %967 = vmatprep.subr.mxu0 0.0
    %968 = vmatpush1.msra.mxu0 %v795
    %969 = vmatprep.subr.mxu0 0.0
    %970 = vmatpush1.msra.mxu0 %v595
    %971 = vmatprep.subr.mxu0 0.0
    %972 = vmatpush1.msra.mxu0 %v590
    %973 = vmatprep.subr.mxu0 0.0
    %974 = vmatpush1.msra.mxu0 %v318
    %975 = vmatprep.subr.mxu0 0.0
    %976 = vmatpush1.msra.mxu0 %v313
    %977 = vmatprep.subr.mxu0 0.0
    %978 = vmatpush1.msra.mxu0 %v184
    %979 = vmatprep.subr.mxu0 0.0
    %980 = vmatpush1.msra.mxu0 %v179
    %981 = vmatprep.subr.mxu0 0.0
    %982 = vmatpush2.msra.mxu0 0.0
    %983 = vmatprep.subr.mxu0 0.0
    %984 = vmatpush2.msra.mxu0 0.0
    %985 = vmatprep.subr.mxu0 0.0
    %986 = vmatpush2.msra.mxu0 0.0
    %987 = vmatprep.subr.mxu0 0.0
    %988 = vmatpush2.msra.mxu0 0.0
    %989 = vmatprep.subr.mxu0 0.0
    %990 = vmatpush2.msra.mxu0 0.0
    %991 = vmatprep.subr.mxu0 0.0
    %992 = vmatpush2.msra.mxu0 0.0
    %993 = vmatprep.subr.mxu0 0.0
    %994 = vmatpush2.msra.mxu0 0.0
    %995 = vmatprep.subr.mxu0 0.0
    %996 = vmatpush2.msra.mxu0 0.0
    %997 = vmatprep.subr.mxu0 0.0
    %998 = vmatpush2.msra.mxu0 0.0
    %999 = vmatprep.subr.mxu0 0.0
    %1000 = vmatpush2.msra.mxu0 0.0
    %1001 = vmatprep.subr.mxu0 0.0
    %1002 = vmatpush2.msra.mxu0 0.0
    %1003 = vmatprep.subr.mxu0 0.0
    %1004 = vmatpush2.msra.mxu0 0.0
    %1005 = vmatprep.subr.mxu0 0.0
    %1006 = vmatpush2.msra.mxu0 0.0
    %1007 = vmatprep.subr.mxu0 0.0
    %1008 = vmatpush2.msra.mxu0 0.0
    %1009 = vmatprep.subr.mxu0 0.0
    %1010 = vmatpush2.msra.mxu0 0.0
    %1011 = vmatprep.subr.mxu0 0.0
    %1012 = vmatpush2.msra.mxu0 0.0
    %1013 = vmatprep.mubr.f32.mxu0 0.0
    %1014 = vmatmul.mubr.f32.gmra.mxu0 %v938
    %v1015 = vpop.f32.mrf.mxu0
    %v1016 = vadd.f32 %v919, %v1015
    %v1017 = vpop.f32.mrf.mxu0
    %1018 = vmatprep.mubr.f32.mxu0 0.0
    %1019 = vmatmul.mubr.f32.gmra.mxu0 %v941
    %v1020 = vpop.f32.mrf.mxu0
    %v1021 = vadd.f32 %v924, %v1020
    %v1022 = vpop.f32.mrf.mxu0
    %1023 = vmatprep.mubr.f32.mxu0 0.0
    %1024 = vmatmul.mubr.f32.gmra.mxu0 %v944
    %v1025 = vpop.f32.mrf.mxu0
    %v1026 = vadd.f32 %v929, %v1025
    %v1027 = vpop.f32.mrf.mxu0
    %1028 = vmatprep.mubr.f32.mxu0 0.0
    %1029 = vmatmul.mubr.f32.gmra.mxu0 %v947
    %v1030 = vpop.f32.mrf.mxu0
    %v1031 = vadd.f32 %v934, %v1030
    %v1032 = vpop.f32.mrf.mxu0
    %1033 = vdwg.mxu0
    %v1034 = vmax.f32 %v1016, 0.0
    %v1035 = vmax.f32 %v1021, 0.0
    %v1036 = vmax.f32 %v1026, 0.0
    %v1037 = vmax.f32 %v1031, 0.0
    %v1038 = vld [vmem:[%s5] sm:$0xff]
    %v1039 = vld [vmem:[%s5 + $0x8] sm:$0xff]
    %v1040 = vld [vmem:[%s6] sm:$0xff]
    %v1041 = vld [vmem:[%s6 + $0x8] sm:$0xff]
    %1043 = vset.pattern.permute.xlu0 0
    %1044 = vperm.xlu0 %1043, %v1040
    %v1045 = vpop.permute.xlu0 %1044
    %1048 = vset.pattern.permute.xlu0 0
    %1049 = vperm.xlu0 %1048, %v1041
    %v1050 = vpop.permute.xlu0 %1049
    %vm1052 = vcmask 261120
    %v1054 = vsel %vm1052, %v1038, 0
    %v1057 = vsel %vm1052, %v1039, 0
    %1059 = vmatprep.subr.mxu0 0.0
    %1060 = vmatpush1.msra.mxu0 0.0
    %1061 = vmatprep.subr.mxu0 0.0
    %1062 = vmatpush1.msra.mxu0 0.0
    %1063 = vmatprep.subr.mxu0 0.0
    %1064 = vmatpush1.msra.mxu0 0.0
    %1065 = vmatprep.subr.mxu0 0.0
    %1066 = vmatpush1.msra.mxu0 0.0
    %1067 = vmatprep.subr.mxu0 0.0
    %1068 = vmatpush1.msra.mxu0 0.0
    %1069 = vmatprep.subr.mxu0 0.0
    %1070 = vmatpush1.msra.mxu0 0.0
    %1071 = vmatprep.subr.mxu0 0.0
    %1072 = vmatpush1.msra.mxu0 0.0
    %1073 = vmatprep.subr.mxu0 0.0
    %1074 = vmatpush1.msra.mxu0 0.0
    %1075 = vmatprep.subr.mxu0 0.0
    %1076 = vmatpush1.msra.mxu0 0.0
    %1077 = vmatprep.subr.mxu0 0.0
    %1078 = vmatpush1.msra.mxu0 0.0
    %1079 = vmatprep.subr.mxu0 0.0
    %1080 = vmatpush1.msra.mxu0 0.0
    %1081 = vmatprep.subr.mxu0 0.0
    %1082 = vmatpush1.msra.mxu0 0.0
    %1083 = vmatprep.subr.mxu0 0.0
    %1084 = vmatpush1.msra.mxu0 %v1037
    %1085 = vmatprep.subr.mxu0 0.0
    %1086 = vmatpush1.msra.mxu0 %v1036
    %1087 = vmatprep.subr.mxu0 0.0
    %1088 = vmatpush1.msra.mxu0 %v1035
    %1089 = vmatprep.subr.mxu0 0.0
    %1090 = vmatpush1.msra.mxu0 %v1034
    %1091 = vmatprep.subr.mxu0 0.0
    %1092 = vmatpush2.msra.mxu0 0.0
    %1093 = vmatprep.subr.mxu0 0.0
    %1094 = vmatpush2.msra.mxu0 0.0
    %1095 = vmatprep.subr.mxu0 0.0
    %1096 = vmatpush2.msra.mxu0 0.0
    %1097 = vmatprep.subr.mxu0 0.0
    %1098 = vmatpush2.msra.mxu0 0.0
    %1099 = vmatprep.subr.mxu0 0.0
    %1100 = vmatpush2.msra.mxu0 0.0
    %1101 = vmatprep.subr.mxu0 0.0
    %1102 = vmatpush2.msra.mxu0 0.0
    %1103 = vmatprep.subr.mxu0 0.0
    %1104 = vmatpush2.msra.mxu0 0.0
    %1105 = vmatprep.subr.mxu0 0.0
    %1106 = vmatpush2.msra.mxu0 0.0
    %1107 = vmatprep.subr.mxu0 0.0
    %1108 = vmatpush2.msra.mxu0 0.0
    %1109 = vmatprep.subr.mxu0 0.0
    %1110 = vmatpush2.msra.mxu0 0.0
    %1111 = vmatprep.subr.mxu0 0.0
    %1112 = vmatpush2.msra.mxu0 0.0
    %1113 = vmatprep.subr.mxu0 0.0
    %1114 = vmatpush2.msra.mxu0 0.0
    %1115 = vmatprep.subr.mxu0 0.0
    %1116 = vmatpush2.msra.mxu0 0.0
    %1117 = vmatprep.subr.mxu0 0.0
    %1118 = vmatpush2.msra.mxu0 0.0
    %1119 = vmatprep.subr.mxu0 0.0
    %1120 = vmatpush2.msra.mxu0 0.0
    %1121 = vmatprep.subr.mxu0 0.0
    %1122 = vmatpush2.msra.mxu0 0.0
    %1123 = vmatprep.mubr.f32.mxu0 0.0
    %1124 = vmatmul.mubr.f32.gmra.mxu0 %v1054
    %v1125 = vpop.f32.mrf.mxu0
    %v1126 = vadd.f32 %v1045, %v1125
    %v1127 = vpop.f32.mrf.mxu0
    %1128 = vmatprep.mubr.f32.mxu0 0.0
    %1129 = vmatmul.mubr.f32.gmra.mxu0 %v1057
    %v1130 = vpop.f32.mrf.mxu0
    %v1131 = vadd.f32 %v1050, %v1130
    %v1132 = vpop.f32.mrf.mxu0
    %1133 = vdwg.mxu0
    %v1134 = vmax.f32 %v1126, 0.0
    %v1135 = vmax.f32 %v1131, 0.0
    %v1136 = vld [vmem:[%s7] sm:$0xff]
    %v1137 = vld [vmem:[%s7 + $0x8] sm:$0xff]
    %1139 = vset.pattern.permute.xlu0 0
    %1140 = vperm.xlu0 %1139, %v1136
    %v1141 = vpop.permute.xlu0 %1140
    %1144 = vset.pattern.permute.xlu0 0
    %1145 = vperm.xlu0 %1144, %v1137
    %v1146 = vpop.permute.xlu0 %1145
    %v1148 = vmul.f32 %v1134, %v1141
    %v1149 = vmul.f32 %v1135, %v1146
    %v1150 = vadd.f32 %v1148, %v1149
    %v1151 = vrot.slane %v1150, 4
    %v1152 = vadd.f32 %v1150, %v1151
    %v1153 = vrot.slane %v1152, 2
    %v1154 = vadd.f32 %v1152, %v1153
    %v1155 = vrot.slane %v1154, 1
    %v1156 = vadd.f32 %v1154, %v1155
    %v1157 = vld [vmem:[#allocation2] sm:$0x1]
    %1159 = vset.pattern.permute.xlu0 0
    %1160 = vperm.xlu0 %1159, %v1157
    %v1161 = vpop.permute.xlu0 %1160
    %v1163 = vlaneseq
    %v1164 = vshrl.u32 %v1163, 7
    %v1165 = vsub.s32 0, %v1164
    %v1166 = vrot.slane %v1161, %v1165
    %v1167 = vadd.f32 %v1156, %v1166
    %v1168 = vadd.f32 %v896, %v907
    %v1169 = vadd.f32 %v1168, %v1167
    %v1170 = vxor.u32 %v1169, 2147483648
    %v1171 = vmul.f32 %v1170, 1.442695
    %v1172 = vpow.pop %v1171
    %v1173 = vadd.f32 %v1172, 1.0
    %v1174 = vrcp.pop %v1173
    %v1175 = vmul.f32 1.0, %v1174
    %1176 = vst [vmem:[#allocation4] sm:$0x1] %v1175
    // Predicated region
    $region42: #{tpu_custom_call.1} parent=1 // pred_check
      _
    $region43: #{tpu_custom_call.1} parent=1 // pred_check_branch
      %1178 = sbr.rel (0) target = $region45
    $region44: #{tpu_custom_call.1} parent=1 // pred_region
      %s1180 = ssub.s32 16, 16
      %1181 = vsyncadd [#allocation5], %s1180
      %s1183 = sshll.u32 [#allocation4], 4
      %s1184 = int_to_ptr.vmem [resolvable:$true] %s1183
      %1186 = dma.vmem_to_hbm [thread:$0]  %s1184, 16, %s10, [#allocation5]
    $region45: #{tpu_custom_call.1} parent=1 // pred_fallthru
      _
    // Predicated region
    $region46: #{tpu_custom_call.1} parent=1 // pred_check
      _
    $region47: #{tpu_custom_call.1} parent=1 // pred_check_branch
      %1188 = sbr.rel (0) target = $region49
    $region48: #{tpu_custom_call.1} parent=1 // pred_region
      %1189 = dma.done [#allocation5], 16
    $region49: #{tpu_custom_call.1} parent=1 // pred_fallthru
      _
    %1190 = vsyncpa [#allocation5], 1

</llo_original>
